<compile_context>
chip_gen: v7x
topology: tpu7x:2x2x1
jax: 0.10.0
libtpu: 0.0.40
codegen_flags: <defaults>
</compile_context>

<pallas_src>
import math
from functools import partial

import jax
import jax.numpy as jnp
from jax import lax
from jax.experimental import pallas as pl
from jax.experimental.pallas import tpu as pltpu

_EPS = 1e-5  # torch nn.LayerNorm default


# --------------------------- tiling / VMEM helpers -------------------------

def _row_tile(M, target):
    """Row tile for token-level kernels (target is a multiple of 8)."""
    return M if M <= target else target


def _pad_rows(x2d, tm):
    """Pad rows up to a multiple of tm (padded rows are sliced off later)."""
    M = x2d.shape[0]
    Mp = ((M + tm - 1) // tm) * tm
    if Mp == M:
        return x2d
    return jnp.pad(x2d, ((0, Mp - M), (0, 0)))


def _seq_tile(n, target, mult):
    """Largest tile <= target that divides n and is a multiple of mult."""
    if n <= target:
        return n
    t = (target // mult) * mult
    while t >= mult:
        if n % t == 0:
            return t
        t -= mult
    # TODO(synk): pad S instead of falling back to a full-extent block.
    return n


def _vmem_limit(weight_bytes, act_tile_bytes):
    """Explicit scoped-VMEM budget: resident weights + double-buffered tiles
    with 2x headroom for in-kernel intermediates; clamped to v7x-safe 64 MiB."""
    est = weight_bytes + 2 * act_tile_bytes
    return int(min(max(2 * est, 32 * 1024 * 1024), 64 * 1024 * 1024))


def _weight_spec(shape):
    """Grid-invariant weight operand: keep a single resident VMEM buffer."""
    try:
        return pl.BlockSpec(shape, lambda i: (0, 0),
                            pipeline_mode=pl.Buffered(buffer_count=1))
    except TypeError:  # older JAX without pipeline_mode: default buffering
        return pl.BlockSpec(shape, lambda i: (0, 0))


# ----------------------------- Pallas kernels ------------------------------

def _ln_qkv_kernel(x_ref, g_ref, b_ref, w_ref, wb_ref, q_ref, k_ref, v_ref,
                   *, eps):
    """Fused LayerNorm(D) + QKV projection on a (tm, D) row tile.

    Emits Q, K, V as three lane-dense bf16 outputs so attention can tile Q
    independently of KV (no [M, 3D] fused intermediate)."""
    x = x_ref[...].astype(jnp.float32)                       # (tm, D)
    mean = jnp.mean(x, axis=-1, keepdims=True)
    var = jnp.mean((x - mean) ** 2, axis=-1, keepdims=True)  # biased, like torch
    xn = (x - mean) * lax.rsqrt(var + eps) * g_ref[...] + b_ref[...]
    # bf16 operands on the MXU, f32 accumulate.
    y = jnp.dot(xn.astype(jnp.bfloat16), w_ref[...],
                preferred_element_type=jnp.float32) + wb_ref[...]     # (tm, 3D)
    D = x_ref.shape[1]
    q_ref[...] = y[:, :D].astype(q_ref.dtype)
    k_ref[...] = y[:, D:2 * D].astype(k_ref.dtype)
    v_ref[...] = y[:, 2 * D:].astype(v_ref.dtype)


def ln_qkv(x2d, gamma, beta, wqkv, bqkv):
    M, D = x2d.shape
    N3 = wqkv.shape[1]
    tm = _row_tile(M, 512)          # mem-bound: large row tile
    xp = _pad_rows(x2d, tm)
    Mp = xp.shape[0]
    vmem = _vmem_limit(int(wqkv.size) * wqkv.dtype.itemsize,
                       tm * (D * 4 + 3 * D * 2))
    q, k, v = pl.pallas_call(
        partial(_ln_qkv_kernel, eps=_EPS),
        out_shape=[jax.ShapeDtypeStruct((Mp, D), jnp.bfloat16)] * 3,
        grid=(Mp // tm,),
        in_specs=[pl.BlockSpec((tm, D), lambda i: (i, 0)),
                  pl.BlockSpec((1, D), lambda i: (0, 0)),
                  pl.BlockSpec((1, D), lambda i: (0, 0)),
                  _weight_spec((D, N3)),
                  pl.BlockSpec((1, N3), lambda i: (0, 0))],
        out_specs=[pl.BlockSpec((tm, D), lambda i: (i, 0))] * 3,
        compiler_params=pltpu.CompilerParams(
            dimension_semantics=("parallel",), vmem_limit_bytes=vmem),
    )(xp, gamma.reshape(1, D), beta.reshape(1, D), wqkv, bqkv.reshape(1, N3))
    if Mp != M:
        q, k, v = q[:M], k[:M], v[:M]
    return q, k, v


def _flash_attn_kernel(q_ref, k_ref, v_ref, m_ref, o_ref,
                       m_sc, l_sc, acc_sc, *, H, scale):
    """Flash-style self-attention, one (batch, q-tile) output block.

    Grid = (B, q_tiles, kv_tiles); kv axis is 'arbitrary' with running
    max/sum/acc scratch. The [B*H, S, S] score tensor never exists in HBM;
    the key mask compare is hoisted out of the head loop."""
    ki = pl.program_id(2)

    @pl.when(ki == 0)
    def _():
        m_sc[...] = jnp.full(m_sc.shape, -jnp.inf, m_sc.dtype)
        l_sc[...] = jnp.zeros(l_sc.shape, l_sc.dtype)
        acc_sc[...] = jnp.zeros(acc_sc.shape, acc_sc.dtype)

    D = q_ref.shape[2]
    dk = D // H
    masked = (m_ref[0] == 0.0)                       # (1, tk) — hoisted once

    # TODO(synk): for dk < 128, pack head pairs so the contraction dim fills
    # the MXU and head slices are 128-lane aligned.
    for h in range(H):                               # static unroll over heads
        sl = slice(h * dk, (h + 1) * dk)
        qh = q_ref[0, :, sl]                         # (tq, dk) bf16
        kh = k_ref[0, :, sl]                         # (tk, dk) bf16
        vh = v_ref[0, :, sl]                         # (tk, dk) bf16
        # QK^T without an explicit transpose: contract last dims on the MXU.
        s = lax.dot_general(qh, kh, (((1,), (1,)), ((), ())),
                            preferred_element_type=jnp.float32)       # (tq, tk)
        s = jnp.where(masked, -1e9, s * scale)       # masked_fill(mask==0,-1e9)
        m_prev = m_sc[h]                             # (tq, 1)
        m_new = jnp.maximum(m_prev, jnp.max(s, axis=-1, keepdims=True))
        alpha = jnp.exp(m_prev - m_new)
        p = jnp.exp(s - m_new)
        l_sc[h] = alpha * l_sc[h] + jnp.sum(p, axis=-1, keepdims=True)
        acc_sc[:, sl] = alpha * acc_sc[:, sl] + jnp.dot(
            p.astype(jnp.bfloat16), vh, preferred_element_type=jnp.float32)
        m_sc[h] = m_new

    @pl.when(ki == pl.num_programs(2) - 1)
    def _():
        for h in range(H):                           # per-head direct stores
            sl = slice(h * dk, (h + 1) * dk)
            o_ref[0, :, sl] = (acc_sc[:, sl] *
                               pl.reciprocal(l_sc[h], approx=True)
                               ).astype(o_ref.dtype)


def flash_attention(q, k, v, mask_b1s, H):
    B, S, D = q.shape
    dk = D // H
    scale = 1.0 / math.sqrt(dk)
    tq = _seq_tile(S, 256, 8)
    tk = _seq_tile(S, 512, 128)
    act = (tq * D + 2 * tk * D) * 2 + tk * 4 + tq * D * 2
    scratch = tq * D * 4 + 2 * H * tq * 4
    return pl.pallas_call(
        partial(_flash_attn_kernel, H=H, scale=scale),
        out_shape=jax.ShapeDtypeStruct((B, S, D), jnp.bfloat16),
        grid=(B, S // tq, S // tk),
        in_specs=[pl.BlockSpec((1, tq, D), lambda b, qi, ki: (b, qi, 0)),
                  pl.BlockSpec((1, tk, D), lambda b, qi, ki: (b, ki, 0)),
                  pl.BlockSpec((1, tk, D), lambda b, qi, ki: (b, ki, 0)),
                  pl.BlockSpec((1, 1, tk), lambda b, qi, ki: (b, 0, ki))],
        out_specs=pl.BlockSpec((1, tq, D), lambda b, qi, ki: (b, qi, 0)),
        scratch_shapes=[pltpu.VMEM((H, tq, 1), jnp.float32),   # running max
                        pltpu.VMEM((H, tq, 1), jnp.float32),   # running sum
                        pltpu.VMEM((tq, D), jnp.float32)],     # running acc
        compiler_params=pltpu.CompilerParams(
            dimension_semantics=("parallel", "parallel", "arbitrary"),
            vmem_limit_bytes=_vmem_limit(0, act + scratch)),
    )(q, k, v, mask_b1s)


def _proj_res_ffn_kernel(a_ref, x_ref, wo_ref, bo_ref, g_ref, b_ref,
                         w1_ref, b1_ref, w2_ref, b2_ref, *rest,
                         eps, final_ln):
    """Fused: x += Wo(attn); x += W2(relu(W1(LN2(x)))); optional final LN."""
    if final_ln:
        fg_ref, fb_ref, o_ref = rest
    else:
        (o_ref,) = rest
    a = a_ref[...].astype(jnp.bfloat16)              # (tm, D) attention output
    x = x_ref[...].astype(jnp.float32)               # (tm, D) residual stream
    # sublayer 1 epilogue: output projection + residual add
    x = x + jnp.dot(a, wo_ref[...], preferred_element_type=jnp.float32) + bo_ref[...]
    # sublayer 2: pre-norm FFN with residual
    mean = jnp.mean(x, axis=-1, keepdims=True)
    var = jnp.mean((x - mean) ** 2, axis=-1, keepdims=True)
    xn = (x - mean) * lax.rsqrt(var + eps) * g_ref[...] + b_ref[...]
    h = jnp.dot(xn.astype(jnp.bfloat16), w1_ref[...],
                preferred_element_type=jnp.float32) + b1_ref[...]
    h = jnp.maximum(h, 0.0)
    y = x + jnp.dot(h.astype(jnp.bfloat16), w2_ref[...],
                    preferred_element_type=jnp.float32) + b2_ref[...]
    if final_ln:                                     # fused encoder-final LN
        mean = jnp.mean(y, axis=-1, keepdims=True)
        var = jnp.mean((y - mean) ** 2, axis=-1, keepdims=True)
        y = (y - mean) * lax.rsqrt(var + eps) * fg_ref[...] + fb_ref[...]
    o_ref[...] = y.astype(o_ref.dtype)


def proj_res_ffn(attn2d, x2d, p, final_ln=None):
    M, D = x2d.shape
    Dff = p["w1"].shape[1]
    tm = _row_tile(M, 256)          # weight-heavy kernel: keep tile modest
    ap = _pad_rows(attn2d, tm)
    xp = _pad_rows(x2d, tm)
    Mp = xp.shape[0]
    w_bytes = sum(int(p[n].size) * p[n].dtype.itemsize for n in ("wo", "w1", "w2"))
    vmem = _vmem_limit(w_bytes, tm * (2 * D * 4 + Dff * 4 + D * 2))

    row = lambda i: (i, 0)
    rep = lambda i: (0, 0)
    in_specs = [pl.BlockSpec((tm, D), row),          # attn output (bf16)
                pl.BlockSpec((tm, D), row),          # residual stream
                _weight_spec((D, D)),                # wo
                pl.BlockSpec((1, D), rep),           # bo
                pl.BlockSpec((1, D), rep),           # ln2 gamma
                pl.BlockSpec((1, D), rep),           # ln2 beta
                _weight_spec((D, Dff)),              # w1
                pl.BlockSpec((1, Dff), rep),         # b1
                _weight_spec((Dff, D)),              # w2
                pl.BlockSpec((1, D), rep)]           # b2
    args = [ap, xp, p["wo"], p["bo"].reshape(1, D),
            p["ln2_g"].reshape(1, D), p["ln2_b"].reshape(1, D),
            p["w1"], p["b1"].reshape(1, Dff), p["w2"], p["b2"].reshape(1, D)]
    if final_ln is not None:
        in_specs += [pl.BlockSpec((1, D), rep), pl.BlockSpec((1, D), rep)]
        args += [final_ln["g"].reshape(1, D), final_ln["b"].reshape(1, D)]

    y = pl.pallas_call(
        partial(_proj_res_ffn_kernel, eps=_EPS, final_ln=final_ln is not None),
        out_shape=jax.ShapeDtypeStruct((Mp, D), jnp.float32),
        grid=(Mp // tm,),
        in_specs=in_specs,
        out_specs=pl.BlockSpec((tm, D), row),
        compiler_params=pltpu.CompilerParams(
            dimension_semantics=("parallel",), vmem_limit_bytes=vmem),
    )(*args)
    return y[:M] if Mp != M else y


def _layernorm_kernel(x_ref, g_ref, b_ref, o_ref, *, eps):
    x = x_ref[...].astype(jnp.float32)
    mean = jnp.mean(x, axis=-1, keepdims=True)
    var = jnp.mean((x - mean) ** 2, axis=-1, keepdims=True)
    o_ref[...] = ((x - mean) * lax.rsqrt(var + eps) * g_ref[...]
                  + b_ref[...]).astype(o_ref.dtype)


def layernorm(x2d, gamma, beta):
    """Standalone final LN (only used when there are zero encoder layers)."""
    M, D = x2d.shape
    tm = _row_tile(M, 512)
    xp = _pad_rows(x2d, tm)
    Mp = xp.shape[0]
    y = pl.pallas_call(
        partial(_layernorm_kernel, eps=_EPS),
        out_shape=jax.ShapeDtypeStruct((Mp, D), x2d.dtype),
        grid=(Mp // tm,),
        in_specs=[pl.BlockSpec((tm, D), lambda i: (i, 0)),
                  pl.BlockSpec((1, D), lambda i: (0, 0)),
                  pl.BlockSpec((1, D), lambda i: (0, 0))],
        out_specs=pl.BlockSpec((tm, D), lambda i: (i, 0)),
        compiler_params=pltpu.CompilerParams(
            dimension_semantics=("parallel",),
            vmem_limit_bytes=_vmem_limit(0, tm * D * 8)),
    )(xp, gamma.reshape(1, D), beta.reshape(1, D))
    return y[:M] if Mp != M else y


# ------------------------------- model glue --------------------------------

def encoder_layer(x, mask_b1s, p, H, final_ln=None):
    B, S, D = x.shape
    x2 = x.reshape(B * S, D)
    # sublayer 1: x + Wo(self_attn(LN1(x)))
    # TODO(synk): dropout inside the residual sublayers is omitted (eval mode).
    q, k, v = ln_qkv(x2, p["ln1_g"], p["ln1_b"], p["wqkv"], p["bqkv"])
    attn = flash_attention(q.reshape(B, S, D), k.reshape(B, S, D),
                           v.reshape(B, S, D), mask_b1s, H)        # (B,S,D) bf16
    # Wo + residual + LN2 + FFN + residual (+ optional final LN), fused
    y = proj_res_ffn(attn.reshape(B * S, D), x2, p, final_ln=final_ln)
    return y.reshape(B, S, D)


def encoder_forward(x, mask, layer_params, final_ln, H):
    B, S, D = x.shape
    mask_b1s = mask.reshape(B, 1, S).astype(jnp.float32)
    n = len(layer_params)
    for li, p in enumerate(layer_params):
        fused = final_ln if li == n - 1 else None    # fuse final LN into last layer
        x = encoder_layer(x, mask_b1s, p, H, final_ln=fused)
    if n == 0:
        x = layernorm(x.reshape(B * S, D), final_ln["g"],
                      final_ln["b"]).reshape(B, S, D)
    return x


def init_params(key, n_layers, D, H, Dff):
    layer_params = []
    for k in jax.random.split(key, n_layers):
        ks = jax.random.split(k, 6)
        wq = 0.02 * jax.random.normal(ks[0], (D, D), jnp.float32)
        wk = 0.02 * jax.random.normal(ks[1], (D, D), jnp.float32)
        wv = 0.02 * jax.random.normal(ks[2], (D, D), jnp.float32)
        layer_params.append({
            # fused Q|K|V projection weight, stored bf16 for the MXU fast path
            "wqkv": jnp.concatenate([wq, wk, wv], axis=1).astype(jnp.bfloat16),
            "bqkv": jnp.zeros((3 * D,), jnp.float32),
            "wo": (0.02 * jax.random.normal(ks[3], (D, D))).astype(jnp.bfloat16),
            "bo": jnp.zeros((D,), jnp.float32),
            "w1": (0.02 * jax.random.normal(ks[4], (D, Dff))).astype(jnp.bfloat16),
            "b1": jnp.zeros((Dff,), jnp.float32),
            "w2": (0.02 * jax.random.normal(ks[5], (Dff, D))).astype(jnp.bfloat16),
            "b2": jnp.zeros((D,), jnp.float32),
            "ln1_g": jnp.ones((D,), jnp.float32),
            "ln1_b": jnp.zeros((D,), jnp.float32),
            "ln2_g": jnp.ones((D,), jnp.float32),
            "ln2_b": jnp.zeros((D,), jnp.float32),
        })
    final_ln = {"g": jnp.ones((D,), jnp.float32), "b": jnp.zeros((D,), jnp.float32)}
    return layer_params, final_ln


if __name__ == "__main__":
    B, S, D, H, Dff, N = 2, 8, 32, 4, 64, 2
    key = jax.random.PRNGKey(0)
    kx, kp = jax.random.split(key)

    x = jax.random.normal(kx, (B, S, D), jnp.float32)
    mask = jnp.ones((B, S), jnp.float32)          # 1.0 = attend, 0.0 = pad
    mask = mask.at[1, S - 2:].set(0.0)            # pad out last 2 keys of batch 1

    layer_params, final_ln = init_params(kp, N, D, H, Dff)

    out = encoder_forward(x, mask, layer_params, final_ln, H)
    jax.block_until_ready(out)
    assert out.shape == (B, S, D)
    assert bool(jnp.all(jnp.isfinite(out)))
    print("KERNEL_OK")
</pallas_src>

<mosaic_0001>
module attributes {stable_mosaic.version = 11 : i64} {
  func.func @_ln_qkv_kernel(%arg0: i32, %arg1: memref<16x32xf32, #tpu.memory_space<vmem>>, %arg2: memref<1x32xf32, #tpu.memory_space<vmem>>, %arg3: memref<1x32xf32, #tpu.memory_space<vmem>>, %arg4: memref<32x96xbf16, #tpu.memory_space<vmem>>, %arg5: memref<1x96xf32, #tpu.memory_space<vmem>>, %arg6: memref<16x32xbf16, #tpu.memory_space<vmem>>, %arg7: memref<16x32xbf16, #tpu.memory_space<vmem>>, %arg8: memref<16x32xbf16, #tpu.memory_space<vmem>>) attributes {dimension_semantics = [#tpu.dimension_semantics<parallel>], iteration_bounds = array<i64: 1>, scalar_prefetch = 0 : i64, scratch_operands = 0 : i64, tpu.core_type = #tpu.core_type<tc>, window_params = [{transform_indices = @transform_0, window_bounds = array<i64: 16, 32>}, {pipeline_mode = #tpu.pipeline_mode<synchronous>, transform_indices = @transform_1, window_bounds = array<i64: 1, 32>}, {pipeline_mode = #tpu.pipeline_mode<synchronous>, transform_indices = @transform_2, window_bounds = array<i64: 1, 32>}, {pipeline_mode = #tpu.pipeline_mode<synchronous>, transform_indices = @transform_3, window_bounds = array<i64: 32, 96>}, {pipeline_mode = #tpu.pipeline_mode<synchronous>, transform_indices = @transform_4, window_bounds = array<i64: 1, 96>}, {transform_indices = @transform_5, window_bounds = array<i64: 16, 32>}, {transform_indices = @transform_6, window_bounds = array<i64: 16, 32>}, {transform_indices = @transform_7, window_bounds = array<i64: 16, 32>}]} {
    %c0 = arith.constant 0 : index
    %c0_0 = arith.constant 0 : index
    %0 = vector.load %arg1[%c0, %c0_0] : memref<16x32xf32, #tpu.memory_space<vmem>>, vector<16x32xf32>
    %cst = arith.constant dense<0.000000e+00> : vector<16xf32>
    %1 = vector.multi_reduction <add>, %0, %cst [1] : vector<16x32xf32> to vector<16xf32>
    %2 = vector.shape_cast %1 : vector<16xf32> to vector<16x1xf32>
    %cst_1 = arith.constant 3.200000e+01 : f32
    %3 = vector.broadcast %cst_1 : f32 to vector<16x1xf32>
    %4 = arith.divf %2, %3 : vector<16x1xf32>
    %5 = vector.broadcast %4 : vector<16x1xf32> to vector<16x32xf32>
    %6 = arith.subf %0, %5 : vector<16x32xf32>
    %7 = arith.mulf %6, %6 : vector<16x32xf32>
    %cst_2 = arith.constant dense<0.000000e+00> : vector<16xf32>
    %8 = vector.multi_reduction <add>, %7, %cst_2 [1] : vector<16x32xf32> to vector<16xf32>
    %9 = vector.shape_cast %8 : vector<16xf32> to vector<16x1xf32>
    %cst_3 = arith.constant 3.200000e+01 : f32
    %10 = vector.broadcast %cst_3 : f32 to vector<16x1xf32>
    %11 = arith.divf %9, %10 : vector<16x1xf32>
    %12 = vector.broadcast %4 : vector<16x1xf32> to vector<16x32xf32>
    %13 = arith.subf %0, %12 : vector<16x32xf32>
    %cst_4 = arith.constant 9.99999974E-6 : f32
    %14 = vector.broadcast %cst_4 : f32 to vector<16x1xf32>
    %15 = arith.addf %11, %14 : vector<16x1xf32>
    %16 = math.rsqrt %15 : vector<16x1xf32>
    %17 = vector.broadcast %16 : vector<16x1xf32> to vector<16x32xf32>
    %18 = arith.mulf %13, %17 : vector<16x32xf32>
    %c0_5 = arith.constant 0 : index
    %c0_6 = arith.constant 0 : index
    %19 = vector.load %arg2[%c0_5, %c0_6] : memref<1x32xf32, #tpu.memory_space<vmem>>, vector<1x32xf32>
    %20 = vector.broadcast %19 : vector<1x32xf32> to vector<16x32xf32>
    %21 = arith.mulf %18, %20 : vector<16x32xf32>
    %c0_7 = arith.constant 0 : index
    %c0_8 = arith.constant 0 : index
    %22 = vector.load %arg3[%c0_7, %c0_8] : memref<1x32xf32, #tpu.memory_space<vmem>>, vector<1x32xf32>
    %23 = vector.broadcast %22 : vector<1x32xf32> to vector<16x32xf32>
    %24 = arith.addf %21, %23 : vector<16x32xf32>
    %25 = arith.truncf %24 : vector<16x32xf32> to vector<16x32xbf16>
    %c0_9 = arith.constant 0 : index
    %c0_10 = arith.constant 0 : index
    %26 = vector.load %arg4[%c0_9, %c0_10] : memref<32x96xbf16, #tpu.memory_space<vmem>>, vector<32x96xbf16>
    %cst_11 = arith.constant dense<0.000000e+00> : vector<16x96xf32>
    %27 = tpu.matmul %25, %26, %cst_11 {dimension_numbers = #tpu.dot_dimension_numbers<[1], [0], [0], [1], [0, 0, 1, 1], [], []>} : vector<16x32xbf16>, vector<32x96xbf16>, vector<16x96xf32> -> vector<16x96xf32>
    %c0_12 = arith.constant 0 : index
    %c0_13 = arith.constant 0 : index
    %28 = vector.load %arg5[%c0_12, %c0_13] : memref<1x96xf32, #tpu.memory_space<vmem>>, vector<1x96xf32>
    %29 = vector.broadcast %28 : vector<1x96xf32> to vector<16x96xf32>
    %30 = arith.addf %27, %29 : vector<16x96xf32>
    %31 = vector.extract_strided_slice %30 {offsets = [0, 0], sizes = [16, 32], strides = [1, 1]} : vector<16x96xf32> to vector<16x32xf32>
    %32 = arith.truncf %31 : vector<16x32xf32> to vector<16x32xbf16>
    %c0_14 = arith.constant 0 : index
    %c0_15 = arith.constant 0 : index
    %33 = vector.load %arg6[%c0_14, %c0_15] : memref<16x32xbf16, #tpu.memory_space<vmem>>, vector<16x32xbf16>
    tpu.vector_store %arg6[%c0_14, %c0_15], %32 {strides = array<i32>} : memref<16x32xbf16, #tpu.memory_space<vmem>>, vector<16x32xbf16>,
    %34 = vector.extract_strided_slice %30 {offsets = [0, 32], sizes = [16, 32], strides = [1, 1]} : vector<16x96xf32> to vector<16x32xf32>
    %35 = arith.truncf %34 : vector<16x32xf32> to vector<16x32xbf16>
    %c0_16 = arith.constant 0 : index
    %c0_17 = arith.constant 0 : index
    %36 = vector.load %arg7[%c0_16, %c0_17] : memref<16x32xbf16, #tpu.memory_space<vmem>>, vector<16x32xbf16>
    tpu.vector_store %arg7[%c0_16, %c0_17], %35 {strides = array<i32>} : memref<16x32xbf16, #tpu.memory_space<vmem>>, vector<16x32xbf16>,
    %37 = vector.extract_strided_slice %30 {offsets = [0, 64], sizes = [16, 32], strides = [1, 1]} : vector<16x96xf32> to vector<16x32xf32>
    %38 = arith.truncf %37 : vector<16x32xf32> to vector<16x32xbf16>
    %c0_18 = arith.constant 0 : index
    %c0_19 = arith.constant 0 : index
    %39 = vector.load %arg8[%c0_18, %c0_19] : memref<16x32xbf16, #tpu.memory_space<vmem>>, vector<16x32xbf16>
    tpu.vector_store %arg8[%c0_18, %c0_19], %38 {strides = array<i32>} : memref<16x32xbf16, #tpu.memory_space<vmem>>, vector<16x32xbf16>,
    return
  }
  func.func @transform_0(%arg0: i32) -> (i32, i32) {
    %c0_i32 = arith.constant 0 : i32
    %c0_i32_0 = arith.constant 0 : i32
    return %arg0, %c0_i32 : i32, i32
  }
  func.func @transform_1(%arg0: i32) -> (i32, i32) {
    %c0_i32 = arith.constant 0 : i32
    %c0_i32_0 = arith.constant 0 : i32
    %c0_i32_1 = arith.constant 0 : i32
    return %c0_i32, %c0_i32_0 : i32, i32
  }
  func.func @transform_2(%arg0: i32) -> (i32, i32) {
    %c0_i32 = arith.constant 0 : i32
    %c0_i32_0 = arith.constant 0 : i32
    %c0_i32_1 = arith.constant 0 : i32
    return %c0_i32, %c0_i32_0 : i32, i32
  }
  func.func @transform_3(%arg0: i32) -> (i32, i32) {
    %c0_i32 = arith.constant 0 : i32
    %c0_i32_0 = arith.constant 0 : i32
    %c0_i32_1 = arith.constant 0 : i32
    return %c0_i32, %c0_i32_0 : i32, i32
  }
  func.func @transform_4(%arg0: i32) -> (i32, i32) {
    %c0_i32 = arith.constant 0 : i32
    %c0_i32_0 = arith.constant 0 : i32
    %c0_i32_1 = arith.constant 0 : i32
    return %c0_i32, %c0_i32_0 : i32, i32
  }
  func.func @transform_5(%arg0: i32) -> (i32, i32) {
    %c0_i32 = arith.constant 0 : i32
    %c0_i32_0 = arith.constant 0 : i32
    return %arg0, %c0_i32 : i32, i32
  }
  func.func @transform_6(%arg0: i32) -> (i32, i32) {
    %c0_i32 = arith.constant 0 : i32
    %c0_i32_0 = arith.constant 0 : i32
    return %arg0, %c0_i32 : i32, i32
  }
  func.func @transform_7(%arg0: i32) -> (i32, i32) {
    %c0_i32 = arith.constant 0 : i32
    %c0_i32_0 = arith.constant 0 : i32
    return %arg0, %c0_i32 : i32, i32
  }
}

</mosaic_0001>

<llo_original>
// kernel: tpu_custom_call.1
$region0: #{tpu_custom_call.1}
  #allocation0 [shape = 'u32[]', space=smem, size = 0x4, offset = 0x4, fixed_abs, tag = 'smem constant byte address 0x4 - core index']
  #allocation1 [shape = 'u32[144,128]{1,0:T(1,128)}', space=vmem, size = 0x12000, scoped, tag = 'internal scratch']
  %s0 = inlined_call_operand.hbm [shape: f32[16,32], index: 0, kind: input, shape index: {}]
  %s1 = inlined_call_operand.vmem [shape: f32[1,32], index: 1, kind: input, shape index: {}]
  %s2 = inlined_call_operand.vmem [shape: f32[1,32], index: 2, kind: input, shape index: {}]
  %s3 = inlined_call_operand.hbm [shape: bf16[32,96], index: 3, kind: input, shape index: {}]
  %s4 = inlined_call_operand.vmem [shape: f32[1,96], index: 4, kind: input, shape index: {}]
  %s5 = inlined_call_operand.hbm [shape: bf16[16,32], index: 5, kind: output, shape index: {0}]
  %s6 = inlined_call_operand.hbm [shape: bf16[16,32], index: 6, kind: output, shape index: {1}]
  %s7 = inlined_call_operand.hbm [shape: bf16[16,32], index: 7, kind: output, shape index: {2}]
  %8 = xla_tuple %s5, %s6, %s7
  %s9 = sld [smem:[#allocation0]]
  $region54: #{tpu_custom_call.1} parent=0
    _
  %s11 = ssub.s32 1, %s9
  %s12 = scalar_select 0, %s11, %s9
  $region1: #{tpu_custom_call.1} parent=0
    #allocation2 [shape = 'u8[8192]{0}', space=vmem, size = 0x2000, scoped, tag = 'input window, operand 0, single buffered']
    #allocation3 [shape = 's32[1]{0}', space=sflag, size = 0x4, scoped, tag = 'scoped memory for tpu_custom_call.1']
    #allocation4 [shape = 's32[1]{0}', space=sflag, size = 0x4, scoped, tag = 'scoped memory for tpu_custom_call.1']
    #allocation5 [shape = 'u8[8192]{0}', space=vmem, size = 0x2000, scoped, tag = 'input window, operand 3, single buffered']
    #allocation6 [shape = 's32[1]{0}', space=sflag, size = 0x4, scoped, tag = 'scoped memory for tpu_custom_call.1']
    #allocation7 [shape = 'u8[4096]{0}', space=vmem, size = 0x1000, scoped, tag = 'output window, operand 0, single buffered']
    #allocation8 [shape = 'u8[4096]{0}', space=vmem, size = 0x1000, scoped, tag = 'output window, operand 1, single buffered']
    #allocation9 [shape = 's32[1]{0}', space=sflag, size = 0x4, scoped, tag = 'scoped memory for tpu_custom_call.1']
    #allocation10 [shape = 'u8[4096]{0}', space=vmem, size = 0x1000, scoped, tag = 'output window, operand 2, single buffered']
    %13 = vsyncpa [#allocation3], 0
    %14 = vsyncpa [#allocation6], 0
    %15 = vsyncpa [#allocation4], 0
    %16 = vsyncpa [#allocation9], 0
    // Predicated region
    $region2: #{tpu_custom_call.1} parent=1 // pred_check
      _
    $region3: #{tpu_custom_call.1} parent=1 // pred_check_branch
      %18 = sbr.rel (0) target = $region5
    $region4: #{tpu_custom_call.1} parent=1 // pred_region
      %s20 = ssub.s32 256, 256
      %21 = vsyncadd [#allocation3], %s20
      %s22 = sshll.u32 [#allocation2], 4
      %s23 = int_to_ptr.vmem [resolvable:$true] %s22
      %28 = dma.hbm_to_vmem [thread:$0]  %s0, 256, %s23, [#allocation3], 128, 128, 8
    $region5: #{tpu_custom_call.1} parent=1 // pred_fallthru
      _
    // Predicated region
    $region6: #{tpu_custom_call.1} parent=1 // pred_check
      _
    $region7: #{tpu_custom_call.1} parent=1 // pred_check_branch
      %30 = sbr.rel (0) target = $region9
    $region8: #{tpu_custom_call.1} parent=1 // pred_region
      _
    $region9: #{tpu_custom_call.1} parent=1 // pred_fallthru
      _
    // Predicated region
    $region10: #{tpu_custom_call.1} parent=1 // pred_check
      _
    $region11: #{tpu_custom_call.1} parent=1 // pred_check_branch
      %32 = sbr.rel (0) target = $region13
    $region12: #{tpu_custom_call.1} parent=1 // pred_region
      _
    $region13: #{tpu_custom_call.1} parent=1 // pred_fallthru
      _
    // Predicated region
    $region14: #{tpu_custom_call.1} parent=1 // pred_check
      _
    $region15: #{tpu_custom_call.1} parent=1 // pred_check_branch
      %34 = sbr.rel (0) target = $region17
    $region16: #{tpu_custom_call.1} parent=1 // pred_region
      %s36 = ssub.s32 256, 256
      %37 = vsyncadd [#allocation6], %s36
      %s38 = sshll.u32 [#allocation5], 4
      %s39 = int_to_ptr.vmem [resolvable:$true] %s38
      %44 = dma.hbm_to_vmem [thread:$0]  %s3, 256, %s39, [#allocation6], 64, 64, 4
    $region17: #{tpu_custom_call.1} parent=1 // pred_fallthru
      _
    // Predicated region
    $region18: #{tpu_custom_call.1} parent=1 // pred_check
      _
    $region19: #{tpu_custom_call.1} parent=1 // pred_check_branch
      %46 = sbr.rel (0) target = $region21
    $region20: #{tpu_custom_call.1} parent=1 // pred_region
      _
    $region21: #{tpu_custom_call.1} parent=1 // pred_fallthru
      _
    // Predicated region
    $region22: #{tpu_custom_call.1} parent=1 // pred_check
      _
    $region23: #{tpu_custom_call.1} parent=1 // pred_check_branch
      %48 = sbr.rel (0) target = $region25
    $region24: #{tpu_custom_call.1} parent=1 // pred_region
      %49 = dma.done [#allocation3], 256
    $region25: #{tpu_custom_call.1} parent=1 // pred_fallthru
      _
    // Predicated region
    $region26: #{tpu_custom_call.1} parent=1 // pred_check
      _
    $region27: #{tpu_custom_call.1} parent=1 // pred_check_branch
      %51 = sbr.rel (0) target = $region29
    $region28: #{tpu_custom_call.1} parent=1 // pred_region
      %52 = dma.done [#allocation6], 256
    $region29: #{tpu_custom_call.1} parent=1 // pred_fallthru
      _
    %v54 = vld [vmem:[#allocation2] sm:$0xff]
    %v55 = vld [vmem:[#allocation2 + $0x8] sm:$0xff]
    %vm56 = vcmask 261120
    %v57 = vsel %vm56, %v54, 0.0
    %58 = vadd.xlane.f32.xlu0 %v57
    %v59 = vpop.xlane.xlu0 %58
    %v60 = vsel %vm56, %v55, 0.0
    %61 = vadd.xlane.f32.xlu0 %v60
    %v62 = vpop.xlane.xlu0 %61
    %v63 = vrcp.pop 32.0
    %v64 = vmul.f32 %v59, %v63
    %v65 = vmul.f32 %v62, %v63
    %v66 = vsub.f32 %v54, %v64
    %v67 = vsub.f32 %v55, %v65
    %v68 = vmul.f32 %v66, %v66
    %v69 = vmul.f32 %v67, %v67
    %v70 = vsel %vm56, %v68, 0.0
    %71 = vadd.xlane.f32.xlu0 %v70
    %v72 = vpop.xlane.xlu0 %71
    %v73 = vsel %vm56, %v69, 0.0
    %74 = vadd.xlane.f32.xlu0 %v73
    %v75 = vpop.xlane.xlu0 %74
    %v76 = vmul.f32 %v72, %v63
    %v77 = vmul.f32 %v75, %v63
    %v78 = vadd.f32 %v76, 1e-05
    %v79 = vadd.f32 %v77, 1e-05
    %v80 = vrsqrt.pop %v78
    %v81 = vrsqrt.pop %v79
    %v82 = vmul.f32 %v66, %v80
    %v83 = vmul.f32 %v67, %v81
    %v84 = vld [vmem:[%s1] sm:$0x1]
    %v86 = vlaneseq
    %v87 = vshrl.u32 %v86, 7
    %v88 = vsub.s32 0, %v87
    %v89 = vrot.slane %v84, %v88
    %v91 = vmul.f32 %v82, %v89
    %v92 = vmul.f32 %v83, %v89
    %v93 = vld [vmem:[%s2] sm:$0x1]
    %v95 = vlaneseq
    %v96 = vshrl.u32 %v95, 7
    %v97 = vsub.s32 0, %v96
    %v98 = vrot.slane %v93, %v97
    %v100 = vadd.f32 %v91, %v98
    %v101 = vadd.f32 %v92, %v98
    %v102 = vpack.c.bf16 %v101, %v100
    %v103 = vld [vmem:[#allocation5] sm:$0xf]
    %v104 = vld [vmem:[#allocation5 + $0x4] sm:$0xf]
    %v105 = vld [vmem:[#allocation5 + $0x8] sm:$0xf]
    %v106 = vld [vmem:[#allocation5 + $0xc] sm:$0xf]
    %v107 = vld [vmem:[%s4] sm:$0x1]
    %v109 = vlaneseq
    %v110 = vshrl.u32 %v109, 7
    %v111 = vsub.s32 0, %v110
    %v112 = vrot.slane %v107, %v111
    %v118 = vunpack.c.l.b16 %v103
    %v119 = vunpack.c.l.b16 %v104
    %v120 = vunpack.c.l.b16 %v105
    %v121 = vunpack.c.l.b16 %v106
    %v122 = vpack.c.b16 %v119, %v118
    %v123 = vpack.c.b16 %v121, %v120
    %v127 = vsel %vm56, %v102, 0
    %129 = vmatprep.subr.bf16.mxu0 0
    %130 = vmatpush1.bf16.msra.mxu0 %v122
    %131 = vmatprep.subr.bf16.mxu0 0
    %132 = vmatpush1.bf16.msra.mxu0 %v123
    %133 = vmatprep.subr.bf16.mxu0 0
    %134 = vmatpush1.bf16.msra.mxu0 0
    %135 = vmatprep.subr.bf16.mxu0 0
    %136 = vmatpush1.bf16.msra.mxu0 0
    %137 = vmatprep.subr.bf16.mxu0 0
    %138 = vmatpush1.bf16.msra.mxu0 0
    %139 = vmatprep.subr.bf16.mxu0 0
    %140 = vmatpush1.bf16.msra.mxu0 0
    %141 = vmatprep.subr.bf16.mxu0 0
    %142 = vmatpush1.bf16.msra.mxu0 0
    %143 = vmatprep.subr.bf16.mxu0 0
    %144 = vmatpush1.bf16.msra.mxu0 0
    %145 = vmatprep.subr.bf16.mxu0 0
    %146 = vmatpush1.bf16.msra.mxu0 0
    %147 = vmatprep.subr.bf16.mxu0 0
    %148 = vmatpush1.bf16.msra.mxu0 0
    %149 = vmatprep.subr.bf16.mxu0 0
    %150 = vmatpush1.bf16.msra.mxu0 0
    %151 = vmatprep.subr.bf16.mxu0 0
    %152 = vmatpush1.bf16.msra.mxu0 0
    %153 = vmatprep.subr.bf16.mxu0 0
    %154 = vmatpush1.bf16.msra.mxu0 0
    %155 = vmatprep.subr.bf16.mxu0 0
    %156 = vmatpush1.bf16.msra.mxu0 0
    %157 = vmatprep.subr.bf16.mxu0 0
    %158 = vmatpush1.bf16.msra.mxu0 0
    %159 = vmatprep.subr.bf16.mxu0 0
    %160 = vmatpush1.bf16.msra.mxu0 0
    %161 = vmatprep.mubr.bf16.mxu0 0
    %162 = vmatmul.mubr.bf16.gmra.mrb[0].mxu0 %v127
    %v163 = vpop.f32.mrb[0].mxu0
    %v164 = vadd.f32 %v112, %v163
    %v165 = vpop.f32.mrb[0].mxu0
    %v166 = vpop.f32.mrb[0].mxu0
    %v167 = vadd.f32 %v112, %v166
    %v168 = vpop.f32.mrb[0].mxu0
    %169 = vdwg.mxu0
    %v170 = vpack.c.bf16 %v167, %v164
    %v172 = vunpack.c.l.b16 %v170
    %v173 = vunpack.c.h.b16 %v170
    %v174 = vpack.c.b16 %v172, %v172
    %v175 = vpack.c.b16 %v173, %v173
    %vm178 = vcmask 257024
    %179 = vst.msk [vmem:[#allocation7] sm:$0xf] %vm178, %v174
    %180 = vst.msk [vmem:[#allocation7 + $0x4] sm:$0xf] %vm178, %v175
    %181 = vrot.lane.b32.xlu0 %v174, 96
    %v182 = vpop.permute.xlu0 %181
    %183 = vrot.lane.b32.xlu0 %v175, 96
    %v184 = vpop.permute.xlu0 %183
    %187 = vst.msk [vmem:[#allocation8] sm:$0xf] %vm178, %v182
    %188 = vst.msk [vmem:[#allocation8 + $0x4] sm:$0xf] %vm178, %v184
    %189 = vrot.lane.b32.xlu0 %v174, 64
    %v190 = vpop.permute.xlu0 %189
    %191 = vrot.lane.b32.xlu0 %v175, 64
    %v192 = vpop.permute.xlu0 %191
    %195 = vst.msk [vmem:[#allocation10] sm:$0xf] %vm178, %v190
    %196 = vst.msk [vmem:[#allocation10 + $0x4] sm:$0xf] %vm178, %v192
    // Predicated region
    $region30: #{tpu_custom_call.1} parent=1 // pred_check
      _
    $region31: #{tpu_custom_call.1} parent=1 // pred_check_branch
      %198 = sbr.rel (0) target = $region33
    $region32: #{tpu_custom_call.1} parent=1 // pred_region
      %s200 = ssub.s32 128, 128
      %201 = vsyncadd [#allocation4], %s200
      %s202 = sshll.u32 [#allocation7], 4
      %s203 = int_to_ptr.vmem [resolvable:$true] %s202
      %208 = dma.vmem_to_hbm [thread:$0]  %s203, 128, %s5, [#allocation4], 64, 64, 4
    $region33: #{tpu_custom_call.1} parent=1 // pred_fallthru
      _
    // Predicated region
    $region34: #{tpu_custom_call.1} parent=1 // pred_check
      _
    $region35: #{tpu_custom_call.1} parent=1 // pred_check_branch
      %210 = sbr.rel (0) target = $region37
    $region36: #{tpu_custom_call.1} parent=1 // pred_region
      %s212 = ssub.s32 128, 128
      %213 = vsyncadd [#allocation9], %s212
      %s214 = sshll.u32 [#allocation8], 4
      %s215 = int_to_ptr.vmem [resolvable:$true] %s214
      %220 = dma.vmem_to_hbm [thread:$0]  %s215, 128, %s6, [#allocation9], 64, 64, 4
    $region37: #{tpu_custom_call.1} parent=1 // pred_fallthru
      _
    // Predicated region
    $region38: #{tpu_custom_call.1} parent=1 // pred_check
      _
    $region39: #{tpu_custom_call.1} parent=1 // pred_check_branch
      %222 = sbr.rel (0) target = $region41
    $region40: #{tpu_custom_call.1} parent=1 // pred_region
      %s224 = ssub.s32 128, 128
      %225 = vsyncadd [#allocation9], %s224
      %s226 = sshll.u32 [#allocation10], 4
      %s227 = int_to_ptr.vmem [resolvable:$true] %s226
      %232 = dma.vmem_to_hbm [thread:$0]  %s227, 128, %s7, [#allocation9], 64, 64, 4
    $region41: #{tpu_custom_call.1} parent=1 // pred_fallthru
      _
    // Predicated region
    $region42: #{tpu_custom_call.1} parent=1 // pred_check
      _
    $region43: #{tpu_custom_call.1} parent=1 // pred_check_branch
      %234 = sbr.rel (0) target = $region45
    $region44: #{tpu_custom_call.1} parent=1 // pred_region
      %235 = dma.done [#allocation4], 128
    $region45: #{tpu_custom_call.1} parent=1 // pred_fallthru
      _
    // Predicated region
    $region46: #{tpu_custom_call.1} parent=1 // pred_check
      _
    $region47: #{tpu_custom_call.1} parent=1 // pred_check_branch
      %237 = sbr.rel (0) target = $region49
    $region48: #{tpu_custom_call.1} parent=1 // pred_region
      %238 = dma.done [#allocation9], 128
    $region49: #{tpu_custom_call.1} parent=1 // pred_fallthru
      _
    // Predicated region
    $region50: #{tpu_custom_call.1} parent=1 // pred_check
      _
    $region51: #{tpu_custom_call.1} parent=1 // pred_check_branch
      %240 = sbr.rel (0) target = $region53
    $region52: #{tpu_custom_call.1} parent=1 // pred_region
      %241 = dma.done [#allocation9], 128
    $region53: #{tpu_custom_call.1} parent=1 // pred_fallthru
      _
    %242 = vsyncpa [#allocation3], 1
    %243 = vsyncpa [#allocation6], 1
    %244 = vsyncpa [#allocation4], 1
    %245 = vsyncpa [#allocation9], 1

</llo_original>
